<compile_context>
chip_gen: v5e
topology: v5e:2x2
jax: 0.10.0
libtpu: 0.0.40
codegen_flags: <defaults>
</compile_context>

<pallas_src>
import functools

import jax
import jax.numpy as jnp
from jax.experimental import pallas as pl
from jax.experimental.pallas import tpu as pltpu

EPS = 1e-6


def _round_up(n: int, m: int) -> int:
    return (n + m - 1) // m * m


def _pow_clamped(x, p, *, eps, low_precision):
    """clamp(x, eps) ** p via exp(p*log(x)), result accumulated in f32.

    low_precision=True runs the log/exp pair in bf16 (v6e/v7x bf16 EUP path,
    ~2x transcendental throughput for bf16 inputs where the single EUP slot is
    the binding resource) while keeping the accumulation in f32.  Default off:
    validate accuracy before enabling.
    """
    if low_precision:
        xb = jnp.maximum(x.astype(jnp.bfloat16), jnp.asarray(eps, jnp.bfloat16))
        return jnp.exp(p.astype(jnp.bfloat16) * jnp.log(xb)).astype(jnp.float32)
    xf = jnp.maximum(x.astype(jnp.float32), jnp.float32(eps))
    return jnp.exp(p * jnp.log(xf))


def _lane_chunk_sum(v, n_chunks):
    """(TM, n_chunks*128) -> (TM, 128) using only aligned lane-chunk VPU adds.

    Keeps the expensive cross-lane (XLU) reduce out of the per-step path; the
    single XLU reduce happens once per row tile in the finalize.
    """
    acc = v[:, 0:128]
    for c in range(1, n_chunks):
        acc = acc + v[:, c * 128:(c + 1) * 128]
    return acc


def _gem_kernel_single(p_ref, x_ref, o_ref, *, hw_true, eps, low_precision):
    # p_ref: SMEM (1,) f32; x_ref: VMEM (TM, HW); o_ref: VMEM (TM, 1)
    p = p_ref[0]
    xp = _pow_clamped(x_ref[...], p, eps=eps, low_precision=low_precision)
    mean = jnp.sum(xp, axis=-1, keepdims=True) * (1.0 / hw_true)
    # Exact 1/p root (no approximate reciprocal here: its error would be
    # amplified by |log(mean)|).
    o_ref[...] = jnp.exp(jnp.log(mean) / p).astype(o_ref.dtype)


def _gem_kernel_multi(p_ref, x_ref, o_ref, acc_ref, *, hw_true, tk, tail_masked,
                      eps, low_precision):
    # p_ref: SMEM (1,) f32; x_ref: VMEM (TM, TK); o_ref: VMEM (TM, 1)
    # acc_ref: VMEM (TM, 128) f32 running per-lane partial sums of clamp(x,eps)**p
    k = pl.program_id(1)
    nk = pl.num_programs(1)
    n_chunks = tk // 128

    @pl.when(k == 0)
    def _():
        acc_ref[...] = jnp.zeros_like(acc_ref)

    p = p_ref[0]
    xp = _pow_clamped(x_ref[...], p, eps=eps, low_precision=low_precision)

    if tail_masked:
        # Only the last HW tile can contain lanes past the true H*W (the block
        # overruns the unpadded array, so those lanes hold garbage).  Interior
        # tiles skip the iota/compare/select entirely.
        @pl.when(k == nk - 1)
        def _():
            col = jax.lax.broadcasted_iota(jnp.int32, xp.shape, 1) + k * tk
            xpm = jnp.where(col < hw_true, xp, 0.0)   # select never leaks garbage
            acc_ref[...] += _lane_chunk_sum(xpm, n_chunks)

        @pl.when(k != nk - 1)
        def _():
            acc_ref[...] += _lane_chunk_sum(xp, n_chunks)
    else:
        acc_ref[...] += _lane_chunk_sum(xp, n_chunks)

    @pl.when(k == nk - 1)
    def _():
        total = jnp.sum(acc_ref[...], axis=-1, keepdims=True)  # one XLU reduce / row tile
        mean = total * (1.0 / hw_true)                          # divide by true H*W
        o_ref[...] = jnp.exp(jnp.log(mean) / p).astype(o_ref.dtype)


def _budgets():
    """Generation-dependent tile caps and scoped-VMEM limit.

    v5e/v6e (128 MiB physical VMEM): larger double-buffered lane tiles
    amortize per-step overhead.  v7x (64 MiB VMEM) and unknown parts fall back
    to the conservative setting.
    """
    tm_max, tk_max, vmem_limit = 512, 2048, 48 * 1024 * 1024
    try:
        vmem_bytes = int(pltpu.get_tpu_info().vmem_capacity_bytes)
        if vmem_bytes >= 96 * 1024 * 1024:
            tm_max, tk_max, vmem_limit = 512, 4096, 64 * 1024 * 1024
    except Exception:
        pass
    return tm_max, tk_max, vmem_limit


def gem_pool(x, p, *, eps=EPS, tm_max=None, tk_max=None, vmem_limit_bytes=None,
             low_precision_pow=False):
    """GeM pooling. x: (B, C, H, W) float, p: (1,) float -> (B, C, 1, 1)."""
    B, C, H, W = x.shape
    BC, HW = B * C, H * W
    x2d = x.reshape(BC, HW)
    p = p.reshape(1).astype(jnp.float32)

    d_tm, d_tk, d_vmem = _budgets()
    tm_max = d_tm if tm_max is None else tm_max
    tk_max = d_tk if tk_max is None else tk_max
    vmem_limit_bytes = d_vmem if vmem_limit_bytes is None else vmem_limit_bytes

    # Row tile: multiple of 8.  Ensure >= 2 row tiles when possible so both
    # v7x TensorCores get work on the "parallel" axis (harmless on 1-TC parts).
    TM = min(tm_max, _round_up(BC, 8))
    if BC > 8 and pl.cdiv(BC, TM) < 2:
        TM = max(8, _round_up(pl.cdiv(BC, 2), 8))
    n_row = pl.cdiv(BC, TM)

    itemsize = jnp.dtype(x2d.dtype).itemsize
    cost = pl.CostEstimate(
        flops=3 * BC * HW,
        transcendentals=2 * BC * HW,
        bytes_accessed=BC * HW * itemsize + BC * itemsize,
    )

    if HW <= tk_max:
        # Single lane tile covering the full H*W: full-dim block is exempt from
        # the 128-divisibility rule; no mask, no accumulator, no padded bytes.
        kernel = functools.partial(
            _gem_kernel_single, hw_true=HW, eps=eps, low_precision=low_precision_pow)
        out2d = pl.pallas_call(
            kernel,
            out_shape=jax.ShapeDtypeStruct((BC, 1), x.dtype),
            grid_spec=pltpu.PrefetchScalarGridSpec(
                num_scalar_prefetch=0,
                grid=(n_row,),
                in_specs=[
                    pl.BlockSpec(memory_space=pltpu.SMEM),        # p (scalar)
                    pl.BlockSpec((TM, HW), lambda i: (i, 0)),     # x row tile
                ],
                out_specs=pl.BlockSpec((TM, 1), lambda i: (i, 0)),
            ),
            compiler_params=pltpu.CompilerParams(
                dimension_semantics=("parallel",),
                vmem_limit_bytes=vmem_limit_bytes,
            ),
            cost_estimate=cost,
        )(p, x2d)
    else:
        TK = max(128, (tk_max // 128) * 128)     # lane tile, multiple of 128
        n_k = pl.cdiv(HW, TK)
        kernel = functools.partial(
            _gem_kernel_multi, hw_true=HW, tk=TK, tail_masked=(HW % TK != 0),
            eps=eps, low_precision=low_precision_pow)
        out2d = pl.pallas_call(
            kernel,
            out_shape=jax.ShapeDtypeStruct((BC, 1), x.dtype),
            grid_spec=pltpu.PrefetchScalarGridSpec(
                num_scalar_prefetch=0,
                grid=(n_row, n_k),
                in_specs=[
                    pl.BlockSpec(memory_space=pltpu.SMEM),            # p (scalar)
                    pl.BlockSpec((TM, TK), lambda i, k: (i, k)),      # x tile
                ],
                out_specs=pl.BlockSpec((TM, 1), lambda i, k: (i, 0)),
                scratch_shapes=[pltpu.VMEM((TM, 128), jnp.float32)],
            ),
            compiler_params=pltpu.CompilerParams(
                dimension_semantics=("parallel", "arbitrary"),
                vmem_limit_bytes=vmem_limit_bytes,
            ),
            cost_estimate=cost,
        )(p, x2d)

    return out2d.reshape(B, C, 1, 1)


def gem_ref(x, p, eps=EPS):
    """Pure-JAX reference mirroring the PyTorch forward."""
    xp = jnp.clip(x, eps) ** p[0]
    pooled = jnp.mean(xp, axis=(-2, -1), keepdims=True)
    return pooled ** (1.0 / p[0])


if __name__ == "__main__":
    key = jax.random.PRNGKey(0)

    # Primary shape from the module spec: (B, C, H, W) = (2, 4, 16, 16).
    B, C, H, W = 2, 4, 16, 16
    x = jax.random.normal(key, (B, C, H, W), dtype=jnp.float32)
    # Deterministic parameter init, matching nn.Parameter(torch.ones(1) * 3).
    p = jnp.ones((1,), dtype=jnp.float32) * 3.0

    out = gem_pool(x, p)
    jax.block_until_ready(out)
    ref = gem_ref(x, p)
    assert out.shape == (B, C, 1, 1), out.shape
    assert jnp.allclose(out, ref, rtol=1e-4, atol=1e-5), float(jnp.max(jnp.abs(out - ref)))

    # Secondary tiny-shape run exercising the multi-step path: BC=10 (partial
    # row tile), HW=400 -> 4 lane tiles of 128 with a masked tail tile.
    x2 = jax.random.normal(jax.random.PRNGKey(1), (2, 5, 20, 20), dtype=jnp.float32)
    out2 = gem_pool(x2, p, tm_max=8, tk_max=128)
    jax.block_until_ready(out2)
    ref2 = gem_ref(x2, p)
    assert out2.shape == (2, 5, 1, 1), out2.shape
    assert jnp.allclose(out2, ref2, rtol=1e-4, atol=1e-5), float(jnp.max(jnp.abs(out2 - ref2)))

    print("KERNEL_OK")
</pallas_src>

<mosaic_0001>
module attributes {stable_mosaic.version = 11 : i64} {
  func.func @_gem_kernel_single(%arg0: i32, %arg1: memref<1xf32, #tpu.memory_space<smem>>, %arg2: memref<8x256xf32, #tpu.memory_space<vmem>>, %arg3: memref<8x1xf32, #tpu.memory_space<vmem>>) attributes {dimension_semantics = [#tpu.dimension_semantics<parallel>], iteration_bounds = array<i64: 1>, scalar_prefetch = 0 : i64, scratch_operands = 0 : i64, tpu.core_type = #tpu.core_type<tc>, window_params = [{transform_indices = @transform_0, window_bounds = array<i64: 1>}, {transform_indices = @transform_1, window_bounds = array<i64: 8, 256>}, {transform_indices = @transform_2, window_bounds = array<i64: 8, 1>}]} {
    %c0 = arith.constant 0 : index
    %0 = memref.load %arg1[%c0] : memref<1xf32, #tpu.memory_space<smem>>
    %c0_0 = arith.constant 0 : index
    %c0_1 = arith.constant 0 : index
    %1 = vector.load %arg2[%c0_0, %c0_1] : memref<8x256xf32, #tpu.memory_space<vmem>>, vector<8x256xf32>
    %cst = arith.constant 9.99999997E-7 : f32
    %2 = vector.broadcast %cst : f32 to vector<8x256xf32>
    %3 = arith.maximumf %1, %2 : vector<8x256xf32>
    %4 = math.log %3 : vector<8x256xf32>
    %5 = vector.broadcast %0 : f32 to vector<8x256xf32>
    %6 = arith.mulf %5, %4 : vector<8x256xf32>
    %7 = math.exp %6 : vector<8x256xf32>
    %cst_2 = arith.constant dense<0.000000e+00> : vector<8xf32>
    %8 = vector.multi_reduction <add>, %7, %cst_2 [1] : vector<8x256xf32> to vector<8xf32>
    %9 = vector.shape_cast %8 : vector<8xf32> to vector<8x1xf32>
    %cst_3 = arith.constant 3.906250e-03 : f32
    %10 = vector.broadcast %cst_3 : f32 to vector<8x1xf32>
    %11 = arith.mulf %9, %10 : vector<8x1xf32>
    %12 = math.log %11 : vector<8x1xf32>
    %13 = vector.broadcast %0 : f32 to vector<8x1xf32>
    %14 = arith.divf %12, %13 : vector<8x1xf32>
    %15 = math.exp %14 : vector<8x1xf32>
    %c0_4 = arith.constant 0 : index
    %c0_5 = arith.constant 0 : index
    %16 = vector.load %arg3[%c0_4, %c0_5] : memref<8x1xf32, #tpu.memory_space<vmem>>, vector<8x1xf32>
    tpu.vector_store %arg3[%c0_4, %c0_5], %15 {strides = array<i32>} : memref<8x1xf32, #tpu.memory_space<vmem>>, vector<8x1xf32>,
    return
  }
  func.func @transform_0(%arg0: i32) -> i32 {
    %c0_i32 = arith.constant 0 : i32
    %c0_i32_0 = arith.constant 0 : i32
    return %c0_i32 : i32
  }
  func.func @transform_1(%arg0: i32) -> (i32, i32) {
    %c0_i32 = arith.constant 0 : i32
    %c0_i32_0 = arith.constant 0 : i32
    return %arg0, %c0_i32 : i32, i32
  }
  func.func @transform_2(%arg0: i32) -> (i32, i32) {
    %c0_i32 = arith.constant 0 : i32
    %c0_i32_0 = arith.constant 0 : i32
    return %arg0, %c0_i32 : i32, i32
  }
}

</mosaic_0001>

<llo_original>
// kernel: tpu_custom_call.1
$region0: #{tpu_custom_call.1}
  #allocation0 [shape = 'u32[]', space=smem, size = 0x4, offset = 0x4, fixed_abs, tag = 'smem constant byte address 0x4 - core index']
  #allocation1 [shape = 'u32[72,128]{1,0:T(1,128)}', space=vmem, size = 0x9000, scoped, tag = 'internal scratch']
  #allocation2 [shape = 'f32[1]{0:T(128)S(6)}', space=smem, size = 0x200, scoped, tag = 'scoped memory for tpu_custom_call.1']
  %s0 = inlined_call_operand.<no memory space> [shape: f32[1], index: 0, kind: input, shape index: {}]
  %s1 = inlined_call_operand.hbm [shape: f32[8,256], index: 1, kind: input, shape index: {}]
  %s2 = inlined_call_operand.vmem [shape: f32[8,1], index: 2, kind: output, shape index: {}]
  %s3 = sld [smem:[#allocation0]]
  $region22: #{tpu_custom_call.1} parent=0
    _
  %s5 = ssub.s32 1, %s3
  %s6 = scalar_select 0, %s5, %s3
  %7 = sst [smem:[#allocation2]] %s0
  $region1: #{tpu_custom_call.1} parent=0
    #allocation3 [shape = 'u8[8192]{0}', space=vmem, size = 0x2000, scoped, tag = 'input window, operand 1, single buffered']
    #allocation4 [shape = 's32[1]{0}', space=sflag, size = 0x4, scoped, tag = 'scoped memory for tpu_custom_call.1']
    %8 = vsyncpa [#allocation4], 0
    // Predicated region
    $region2: #{tpu_custom_call.1} parent=1 // pred_check
      _
    $region3: #{tpu_custom_call.1} parent=1 // pred_check_branch
      %10 = sbr.rel (0) target = $region5
    $region4: #{tpu_custom_call.1} parent=1 // pred_region
      _
    $region5: #{tpu_custom_call.1} parent=1 // pred_fallthru
      _
    // Predicated region
    $region6: #{tpu_custom_call.1} parent=1 // pred_check
      _
    $region7: #{tpu_custom_call.1} parent=1 // pred_check_branch
      %12 = sbr.rel (0) target = $region9
    $region8: #{tpu_custom_call.1} parent=1 // pred_region
      %14 = vsyncadd [#allocation4], 0
      %s16 = sshll.u32 %s1, 4
      %s17 = int_to_ptr.hbm [resolvable:$true] %s16
      %s18 = sshll.u32 [#allocation3], 4
      %s19 = int_to_ptr.vmem [resolvable:$true] %s18
      %21 = dma.hbm_to_vmem [thread:$0]  %s17, 256, %s19, [#allocation4]
    $region9: #{tpu_custom_call.1} parent=1 // pred_fallthru
      _
    // Predicated region
    $region10: #{tpu_custom_call.1} parent=1 // pred_check
      _
    $region11: #{tpu_custom_call.1} parent=1 // pred_check_branch
      %23 = sbr.rel (0) target = $region13
    $region12: #{tpu_custom_call.1} parent=1 // pred_region
      %25 = dma.done [#allocation4], 256
    $region13: #{tpu_custom_call.1} parent=1 // pred_fallthru
      _
    %s26 = sld [smem:[#allocation2]]
    %v27 = vld [vmem:[#allocation3] sm:$0xff]
    %v28 = vld [vmem:[#allocation3 + $0x8] sm:$0xff]
    %v29 = vmax.f32 %v27, 1e-06
    %v30 = vmax.f32 %v28, 1e-06
    %v31 = vlog2.pop %v29
    %v32 = vmul.f32 %v31, 0.6931472
    %v33 = vlog2.pop %v30
    %v34 = vmul.f32 %v33, 0.6931472
    %v35 = vstv %s26
    %v36 = vmul.f32 %v35, %v32
    %v37 = vmul.f32 %v35, %v34
    %v38 = vmul.f32 %v36, 1.442695
    %v39 = vpow.pop %v38
    %v40 = vmul.f32 %v37, 1.442695
    %v41 = vpow.pop %v40
    %v42 = vadd.f32 %v39, %v41
    %43 = vadd.xlane.f32.xlu0 %v42
    %v44 = vpop.xlane.xlu0 %43
    %v45 = vmul.f32 %v44, 0.00390625
    %v46 = vlog2.pop %v45
    %v47 = vmul.f32 %v46, 0.6931472
    %v48 = vrcp.pop %v35
    %v49 = vmul.f32 %v35, %v48
    %v50 = vsub.f32 1.0, %v49
    %v51 = vmul.f32 %v48, %v50
    %v52 = vadd.f32 %v48, %v51
    %vm53 = vweird.f32 %v35
    %vm54 = vweird.f32 %v48
    %vm55 = vmor %vm53, %vm54
    %v56 = vsel %vm55, %v48, %v52
    %v57 = vand.u32 2147483647, %v35
    %vm58 = vcmp.eq.f32.partialorder %v57, 8.507059e+37
    %v59 = vand.u32 %v35, 2147483648
    %v60 = vor.u32 1.1754944e-38, %v59
    %v61 = vsel %vm58, %v60, %v56
    %v62 = vmul.f32 %v47, %v61
    %v63 = vmul.f32 %v62, 1.442695
    %v64 = vpow.pop %v63
    %vm65 = vcmask 7168
    %66 = vst.msk [vmem:[%s2] sm:$0xff] %vm65, %v64
    // Predicated region
    $region14: #{tpu_custom_call.1} parent=1 // pred_check
      _
    $region15: #{tpu_custom_call.1} parent=1 // pred_check_branch
      %68 = sbr.rel (0) target = $region17
    $region16: #{tpu_custom_call.1} parent=1 // pred_region
      _
    $region17: #{tpu_custom_call.1} parent=1 // pred_fallthru
      _
    // Predicated region
    $region18: #{tpu_custom_call.1} parent=1 // pred_check
      _
    $region19: #{tpu_custom_call.1} parent=1 // pred_check_branch
      %70 = sbr.rel (0) target = $region21
    $region20: #{tpu_custom_call.1} parent=1 // pred_region
      _
    $region21: #{tpu_custom_call.1} parent=1 // pred_fallthru
      _
    %71 = vsyncpa [#allocation4], 1

</llo_original>
